<compile_context>
chip_gen: v5e
topology: v5e:2x2
jax: 0.10.0
libtpu: 0.0.40
codegen_flags: <defaults>
</compile_context>

<pallas_src>
import jax
import jax.numpy as jnp
from jax.experimental import pallas as pl
from jax.experimental.pallas import tpu as pltpu

LANE = 128
_VMEM_LIMIT = 32 * 1024 * 1024        # safe scoped-VMEM limit on all gens (v7x physical = 64 MiB)
_FAST_ROW_BYTES = 4 * 1024 * 1024     # use full (1, C, HW) row blocks when a row is <= 4 MiB
_TILE_BUDGET_BYTES = 8 * 1024 * 1024  # ~4 live (1, C, thw) f32 copies in the apply pass


def _pick_hw_tile(hw, c):
    """Largest lane-dense (multiple-of-128) HW tile fitting the VMEM tile budget.

    Prefers a tile that divides HW exactly (no masked tail) but never drops below
    half of the budget-derived cap just to obtain divisibility."""
    max_thw = max(LANE, (_TILE_BUDGET_BYTES // (16 * c)) // LANE * LANE)
    hw_ceil = -(-hw // LANE) * LANE
    cap = min(2048, max_thw, hw_ceil)
    for thw in range(cap, max(LANE, cap // 2) - 1, -LANE):
        if hw % thw == 0:
            return thw
    return cap


def bam_channel(x_nchw, w1, b1, w2, b2, gamma, beta):
    """x_nchw: (B, C, H, W) float32. Returns (B, C, H, W)."""
    B, C, H, W = x_nchw.shape
    HW = H * W
    inv_hw = 1.0 / float(HW)

    x_flat = x_nchw.reshape(B, C, HW)            # free reshape (no data movement)
    fast = (C * HW * 4) <= _FAST_ROW_BYTES

    # ------------------------------------------------------------------ pass 1
    # Global average pool -> pooled_2d (B, C).
    if fast:
        def pool_full_kernel(x_ref, out_ref):
            out_ref[...] = jnp.sum(x_ref[...], axis=-1, keepdims=True) * inv_hw

        pooled = pl.pallas_call(
            pool_full_kernel,
            out_shape=jax.ShapeDtypeStruct((B, C, 1), jnp.float32),
            grid=(B,),
            in_specs=[pl.BlockSpec((1, C, HW), lambda b: (b, 0, 0))],
            out_specs=pl.BlockSpec((1, C, 1), lambda b: (b, 0, 0)),
            compiler_params=pltpu.CompilerParams(
                dimension_semantics=("parallel",),
                vmem_limit_bytes=_VMEM_LIMIT),
        )(x_flat)
        pooled_2d = pooled.reshape(B, C)
    else:
        thw = _pick_hw_tile(HW, C)
        n_hw = -(-HW // thw)
        # Split the HW reduction into 2 "parallel" super-chunks for small batch so
        # both v7x TensorCores stream HBM (harmless on v5e/v6e).  Even splits only,
        # so no fully out-of-range blocks are ever addressed.
        n_split = 2 if (B < 4 and n_hw >= 2 and n_hw % 2 == 0) else 1
        n_k = n_hw // n_split
        needs_mask = (HW % thw) != 0

        def pool_kernel(x_ref, sum_ref):
            k = pl.program_id(2)

            @pl.when(k == 0)
            def _():
                sum_ref[...] = jnp.zeros_like(sum_ref)

            x = x_ref[...]                                      # (1, C, thw)
            if needs_mask:
                # Mask lanes past HW on the ragged tail tile (Pallas does not
                # zero-fill out-of-bounds reads of edge blocks).
                s = pl.program_id(0)
                start = (s * n_k + k) * thw
                lane = jax.lax.broadcasted_iota(jnp.int32, (1, C, thw), 2)
                x = jnp.where(start + lane < HW, x, 0.0)
            sum_ref[...] += jnp.sum(x, axis=-1, keepdims=True)[None]

        partial = pl.pallas_call(
            pool_kernel,
            out_shape=jax.ShapeDtypeStruct((n_split, B, C, 1), jnp.float32),
            grid=(n_split, B, n_k),
            in_specs=[pl.BlockSpec((1, C, thw),
                                   lambda s, b, k: (b, 0, s * n_k + k))],
            out_specs=pl.BlockSpec((1, 1, C, 1), lambda s, b, k: (s, b, 0, 0)),
            compiler_params=pltpu.CompilerParams(
                dimension_semantics=("parallel", "parallel", "arbitrary"),
                vmem_limit_bytes=_VMEM_LIMIT),
        )(x_flat)
        pooled_2d = jnp.sum(partial[..., 0], axis=0) * inv_hw    # (B, C)

    # ------------------------------------------------------------------ gate
    # fc1 -> fc2 -> BatchNorm2d (training-mode batch stats, biased var, eps=1e-5)
    # -> sigmoid.  Microscopic work: plain jnp (XLA fuses it into one tiny op).
    h = pooled_2d @ w1.T + b1                        # (B, Cr)
    se = h @ w2.T + b2                               # (B, C)
    mu = jnp.mean(se, axis=0, keepdims=True)
    var = jnp.mean((se - mu) * (se - mu), axis=0, keepdims=True)
    se_bn = (se - mu) * jax.lax.rsqrt(var + 1e-5) * gamma + beta
    gate = jax.nn.sigmoid(se_bn)                     # (B, C)
    gate3 = gate[:, :, None]                         # (B, C, 1): channels on sublanes

    # ------------------------------------------------------------------ pass 2
    # out = x * gate.  Fully parallel, pipelined, lane-dense blocks; the per-row
    # gate block is resident across all HW tiles of a batch row.
    def apply_kernel(gate_ref, x_ref, out_ref):
        g = gate_ref[...]                            # hoisted once per tile
        out_ref[...] = x_ref[...] * g

    if fast:
        out_flat = pl.pallas_call(
            apply_kernel,
            out_shape=jax.ShapeDtypeStruct((B, C, HW), jnp.float32),
            grid=(B,),
            in_specs=[pl.BlockSpec((1, C, 1), lambda b: (b, 0, 0)),
                      pl.BlockSpec((1, C, HW), lambda b: (b, 0, 0))],
            out_specs=pl.BlockSpec((1, C, HW), lambda b: (b, 0, 0)),
            compiler_params=pltpu.CompilerParams(
                dimension_semantics=("parallel",),
                vmem_limit_bytes=_VMEM_LIMIT),
        )(gate3, x_flat)
    else:
        out_flat = pl.pallas_call(
            apply_kernel,
            out_shape=jax.ShapeDtypeStruct((B, C, HW), jnp.float32),
            grid=(B, n_hw),
            in_specs=[
                pl.BlockSpec((1, C, 1), lambda b, k: (b, 0, 0)),    # gate: resident
                pl.BlockSpec((1, C, thw), lambda b, k: (b, 0, k)),  # x tile
            ],
            out_specs=pl.BlockSpec((1, C, thw), lambda b, k: (b, 0, k)),
            compiler_params=pltpu.CompilerParams(
                dimension_semantics=("parallel", "parallel"),
                vmem_limit_bytes=_VMEM_LIMIT),
        )(gate3, x_flat)

    return out_flat.reshape(B, C, H, W)


def reference(x_nchw, w1, b1, w2, b2, gamma, beta):
    pooled = jnp.mean(x_nchw, axis=(2, 3))                 # (B, C)
    h = pooled @ w1.T + b1                                 # (B, Cr)
    se = h @ w2.T + b2                                     # (B, C)
    mu = jnp.mean(se, axis=0, keepdims=True)
    var = jnp.mean((se - mu) ** 2, axis=0, keepdims=True)
    se_bn = (se - mu) / jnp.sqrt(var + 1e-5) * gamma + beta
    gate = jax.nn.sigmoid(se_bn)
    return x_nchw * gate[:, :, None, None]


if __name__ == "__main__":
    def make_inputs(key, B, C, H, W, reduce_rate):
        Cr = C // reduce_rate
        kx, kw1, kb1, kw2, kb2, kg, kbt = jax.random.split(key, 7)
        x = jax.random.normal(kx, (B, C, H, W), dtype=jnp.float32)
        lim1 = 1.0 / (C ** 0.5)
        w1 = jax.random.uniform(kw1, (Cr, C), minval=-lim1, maxval=lim1, dtype=jnp.float32)
        b1 = jax.random.uniform(kb1, (Cr,), minval=-lim1, maxval=lim1, dtype=jnp.float32)
        lim2 = 1.0 / (Cr ** 0.5)
        w2 = jax.random.uniform(kw2, (C, Cr), minval=-lim2, maxval=lim2, dtype=jnp.float32)
        b2 = jax.random.uniform(kb2, (C,), minval=-lim2, maxval=lim2, dtype=jnp.float32)
        gamma = jax.random.uniform(kg, (C,), minval=0.5, maxval=1.5, dtype=jnp.float32)
        beta = jax.random.uniform(kbt, (C,), minval=-0.5, maxval=0.5, dtype=jnp.float32)
        return x, w1, b1, w2, b2, gamma, beta

    key = jax.random.PRNGKey(0)
    k1, k2 = jax.random.split(key)

    fn = jax.jit(bam_channel)

    # Case 1: small feature map -> fast path (full (1, C, HW) row blocks, grid (B,)).
    args1 = make_inputs(k1, 2, 64, 16, 16, 16)
    out1 = jax.block_until_ready(fn(*args1))
    ref1 = reference(*args1)
    assert out1.shape == args1[0].shape
    assert jnp.allclose(out1, ref1, atol=1e-4, rtol=1e-4), "fast-path mismatch vs reference"

    # Case 2: larger, non-128-multiple spatial extent -> tiled path (lane-dense 2048-wide
    # tiles, masked ragged tail, HW reduction split across 2 parallel super-chunks).
    args2 = make_inputs(k2, 2, 64, 139, 140, 16)
    out2 = jax.block_until_ready(fn(*args2))
    ref2 = reference(*args2)
    assert out2.shape == args2[0].shape
    assert jnp.allclose(out2, ref2, atol=1e-4, rtol=1e-4), "tiled-path mismatch vs reference"

    print("KERNEL_OK")
</pallas_src>

<mosaic_0001>
module attributes {stable_mosaic.version = 11 : i64} {
  func.func @pool_full_kernel(%arg0: i32, %arg1: memref<1x64x256xf32, #tpu.memory_space<vmem>>, %arg2: memref<1x64x1xf32, #tpu.memory_space<vmem>>) attributes {dimension_semantics = [#tpu.dimension_semantics<parallel>], iteration_bounds = array<i64: 2>, scalar_prefetch = 0 : i64, scratch_operands = 0 : i64, tpu.core_type = #tpu.core_type<tc>, window_params = [{transform_indices = @transform_0, window_bounds = array<i64: 1, 64, 256>}, {transform_indices = @transform_1, window_bounds = array<i64: 1, 64, 1>}]} {
    %c0 = arith.constant 0 : index
    %c0_0 = arith.constant 0 : index
    %c0_1 = arith.constant 0 : index
    %0 = vector.load %arg1[%c0, %c0_0, %c0_1] : memref<1x64x256xf32, #tpu.memory_space<vmem>>, vector<1x64x256xf32>
    %cst = arith.constant dense<0.000000e+00> : vector<1x64xf32>
    %1 = vector.multi_reduction <add>, %0, %cst [2] : vector<1x64x256xf32> to vector<1x64xf32>
    %2 = vector.shape_cast %1 : vector<1x64xf32> to vector<1x64x1xf32>
    %cst_2 = arith.constant 3.906250e-03 : f32
    %3 = vector.broadcast %cst_2 : f32 to vector<1x64x1xf32>
    %4 = arith.mulf %2, %3 : vector<1x64x1xf32>
    %c0_3 = arith.constant 0 : index
    %c0_4 = arith.constant 0 : index
    %c0_5 = arith.constant 0 : index
    %5 = vector.load %arg2[%c0_3, %c0_4, %c0_5] : memref<1x64x1xf32, #tpu.memory_space<vmem>>, vector<1x64x1xf32>
    tpu.vector_store %arg2[%c0_3, %c0_4, %c0_5], %4 {strides = array<i32>} : memref<1x64x1xf32, #tpu.memory_space<vmem>>, vector<1x64x1xf32>,
    return
  }
  func.func @transform_0(%arg0: i32) -> (i32, i32, i32) {
    %c0_i32 = arith.constant 0 : i32
    %c0_i32_0 = arith.constant 0 : i32
    %c0_i32_1 = arith.constant 0 : i32
    return %arg0, %c0_i32, %c0_i32_0 : i32, i32, i32
  }
  func.func @transform_1(%arg0: i32) -> (i32, i32, i32) {
    %c0_i32 = arith.constant 0 : i32
    %c0_i32_0 = arith.constant 0 : i32
    %c0_i32_1 = arith.constant 0 : i32
    return %arg0, %c0_i32, %c0_i32_0 : i32, i32, i32
  }
}

module attributes {stable_mosaic.version = 11 : i64} {
  func.func @apply_kernel(%arg0: i32, %arg1: memref<1x64x1xf32, #tpu.memory_space<vmem>>, %arg2: memref<1x64x256xf32, #tpu.memory_space<vmem>>, %arg3: memref<1x64x256xf32, #tpu.memory_space<vmem>>) attributes {dimension_semantics = [#tpu.dimension_semantics<parallel>], iteration_bounds = array<i64: 2>, scalar_prefetch = 0 : i64, scratch_operands = 0 : i64, tpu.core_type = #tpu.core_type<tc>, window_params = [{transform_indices = @transform_0, window_bounds = array<i64: 1, 64, 1>}, {transform_indices = @transform_1, window_bounds = array<i64: 1, 64, 256>}, {transform_indices = @transform_2, window_bounds = array<i64: 1, 64, 256>}]} {
    %c0 = arith.constant 0 : index
    %c0_0 = arith.constant 0 : index
    %c0_1 = arith.constant 0 : index
    %0 = vector.load %arg1[%c0, %c0_0, %c0_1] : memref<1x64x1xf32, #tpu.memory_space<vmem>>, vector<1x64x1xf32>
    %c0_2 = arith.constant 0 : index
    %c0_3 = arith.constant 0 : index
    %c0_4 = arith.constant 0 : index
    %1 = vector.load %arg2[%c0_2, %c0_3, %c0_4] : memref<1x64x256xf32, #tpu.memory_space<vmem>>, vector<1x64x256xf32>
    %2 = vector.broadcast %0 : vector<1x64x1xf32> to vector<1x64x256xf32>
    %3 = arith.mulf %1, %2 : vector<1x64x256xf32>
    %c0_5 = arith.constant 0 : index
    %c0_6 = arith.constant 0 : index
    %c0_7 = arith.constant 0 : index
    %4 = vector.load %arg3[%c0_5, %c0_6, %c0_7] : memref<1x64x256xf32, #tpu.memory_space<vmem>>, vector<1x64x256xf32>
    tpu.vector_store %arg3[%c0_5, %c0_6, %c0_7], %3 {strides = array<i32>} : memref<1x64x256xf32, #tpu.memory_space<vmem>>, vector<1x64x256xf32>,
    return
  }
  func.func @transform_0(%arg0: i32) -> (i32, i32, i32) {
    %c0_i32 = arith.constant 0 : i32
    %c0_i32_0 = arith.constant 0 : i32
    %c0_i32_1 = arith.constant 0 : i32
    return %arg0, %c0_i32, %c0_i32_0 : i32, i32, i32
  }
  func.func @transform_1(%arg0: i32) -> (i32, i32, i32) {
    %c0_i32 = arith.constant 0 : i32
    %c0_i32_0 = arith.constant 0 : i32
    %c0_i32_1 = arith.constant 0 : i32
    return %arg0, %c0_i32, %c0_i32_0 : i32, i32, i32
  }
  func.func @transform_2(%arg0: i32) -> (i32, i32, i32) {
    %c0_i32 = arith.constant 0 : i32
    %c0_i32_0 = arith.constant 0 : i32
    %c0_i32_1 = arith.constant 0 : i32
    return %arg0, %c0_i32, %c0_i32_0 : i32, i32, i32
  }
}

</mosaic_0001>

<llo_original>
// kernel: bam_channel.3
$region0: #{bam_channel.3}
  #allocation0 [shape = 'u32[]', space=smem, size = 0x4, offset = 0x4, fixed_abs, tag = 'smem constant byte address 0x4 - core index']
  #allocation1 [shape = 'u32[72,128]{1,0:T(1,128)}', space=vmem, size = 0x9000, scoped, tag = 'internal scratch']
  %s0 = inlined_call_operand.vmem [shape: f32[2,64,1], index: 0, kind: input, shape index: {}]
  %s1 = inlined_call_operand.vmem [shape: f32[2,64,256], index: 1, kind: input, shape index: {}]
  %s2 = inlined_call_operand.vmem [shape: f32[2,64,256], index: 2, kind: output, shape index: {}]
  %s3 = sld [smem:[#allocation0]]
  $region41: #{bam_channel.3} parent=0
    _
  %s5 = ssub.s32 1, %s3
  %s6 = scalar_select 0, %s5, %s3
  loop: start=0, step=1, limit=4
  $region2: #{bam_channel.3} parent=0 // loop_pre_header
    _
  $region3: #{bam_channel.3} parent=0 // loop_header
    %s8 = sphi 0, %s12
    %p9 = scmp.ge.s32.totalorder %s8, 4
    %s18 = sphi 0, %s20
    %s21 = sphi 0, %s18
    %s22 = sphi 0, %s21
    %s38 = sphi 0, %s22
    %s44 = sphi 0, %s46
    %s47 = sphi 0, %s44
    %s48 = sphi 0, %s47
    %s64 = sphi 0, %s48
    %s70 = sphi 0, %s72
    %s73 = sphi 0, %s70
    %s74 = sphi 0, %s73
    %s90 = sphi 0, %s74
  $region4: #{bam_channel.3} parent=0 // loop_header_branch
    %11 = sbr.rel (%p9) target = $region8
  $region5: #{bam_channel.3} parent=0 // loop_body
    %s13 = ssub.s32 %s8, 1
    %s14 = ssub.s32 %s8, 2
    %s15 = sadd.s32 %s8, 1
    %s16 = ssub.s32 %s8, %s15
    %p17 = scmp.eq.s32.totalorder %s16, 0
    %s19 = sadd.s32 %s18, 1
    %s20 = scalar_select %p17, %s18, %s19
    %p23 = pneg %p17
    %p24 = scmp.eq.s32.totalorder %s8, 1
    %p25 = por %p23, %p24
    %p26 = scmp.ne.s32.totalorder %s18, %s21
    %p27 = scmp.eq.s32.totalorder %s8, 0
    %p28 = por %p26, %p27
    %p29 = scmp.ne.s32.totalorder %s18, %s21
    %p30 = scmp.eq.s32.totalorder %s13, 1
    %p31 = por %p29, %p30
    %p32 = scmp.ne.s32.totalorder %s21, %s22
    %p33 = scmp.eq.s32.totalorder %s13, 0
    %p34 = por %p32, %p33
    %p35 = scmp.ne.s32.totalorder %s21, %s22
    %p36 = scmp.eq.s32.totalorder %s14, 1
    %p37 = por %p35, %p36
    %p39 = scmp.ne.s32.totalorder %s22, %s38
    %p40 = scmp.eq.s32.totalorder %s14, 0
    %p41 = por %p39, %p40
    %s42 = ssub.s32 %s8, %s15
    %p43 = scmp.eq.s32.totalorder %s42, 0
    %s45 = sadd.s32 %s44, 1
    %s46 = scalar_select %p43, %s44, %s45
    %p49 = pneg %p43
    %p50 = scmp.eq.s32.totalorder %s8, 1
    %p51 = por %p49, %p50
    %p52 = scmp.ne.s32.totalorder %s44, %s47
    %p53 = scmp.eq.s32.totalorder %s8, 0
    %p54 = por %p52, %p53
    %p55 = scmp.ne.s32.totalorder %s44, %s47
    %p56 = scmp.eq.s32.totalorder %s13, 1
    %p57 = por %p55, %p56
    %p58 = scmp.ne.s32.totalorder %s47, %s48
    %p59 = scmp.eq.s32.totalorder %s13, 0
    %p60 = por %p58, %p59
    %p61 = scmp.ne.s32.totalorder %s47, %s48
    %p62 = scmp.eq.s32.totalorder %s14, 1
    %p63 = por %p61, %p62
    %p65 = scmp.ne.s32.totalorder %s48, %s64
    %p66 = scmp.eq.s32.totalorder %s14, 0
    %p67 = por %p65, %p66
    %s68 = ssub.s32 %s8, %s15
    %p69 = scmp.eq.s32.totalorder %s68, 0
    %s71 = sadd.s32 %s70, 1
    %s72 = scalar_select %p69, %s70, %s71
    %p75 = pneg %p69
    %p76 = scmp.eq.s32.totalorder %s8, 1
    %p77 = por %p75, %p76
    %p78 = scmp.ne.s32.totalorder %s70, %s73
    %p79 = scmp.eq.s32.totalorder %s8, 0
    %p80 = por %p78, %p79
    %p81 = scmp.ne.s32.totalorder %s70, %s73
    %p82 = scmp.eq.s32.totalorder %s13, 1
    %p83 = por %p81, %p82
    %p84 = scmp.ne.s32.totalorder %s73, %s74
    %p85 = scmp.eq.s32.totalorder %s13, 0
    %p86 = por %p84, %p85
    %p87 = scmp.ne.s32.totalorder %s73, %s74
    %p88 = scmp.eq.s32.totalorder %s14, 1
    %p89 = por %p87, %p88
    %p91 = scmp.ne.s32.totalorder %s74, %s90
    %p92 = scmp.eq.s32.totalorder %s14, 0
    %p93 = por %p91, %p92
    %p94 = scmp.le.s32.totalorder 1, %s8
    %p95 = scmp.lt.s32.totalorder %s8, 3
    %p96 = pnand %p94, %p95
    %p97 = pneg %p96
    // Predicated region
    $region9: #{bam_channel.3} parent=5 // pred_check
      _
    $region10: #{bam_channel.3} parent=5 // pred_check_branch
      %99 = sbr.rel (%p96) target = $region12
    $region11: #{bam_channel.3} parent=5 // pred_region
      %s100 = ssub.s32 %s8, 1
    $region12: #{bam_channel.3} parent=5 // pred_fallthru
      _
    %p101 = scmp.lt.s32.totalorder %s8, 2
    // Predicated region
    $region13: #{bam_channel.3} parent=5 // pred_check
      %p102 = pneg %p101
    $region14: #{bam_channel.3} parent=5 // pred_check_branch
      %104 = sbr.rel (%p102) target = $region16
    $region15: #{bam_channel.3} parent=5 // pred_region
      // Predicated region
      $region17: #{bam_channel.3} parent=15 // pred_check
        %p105 = pneg %p28
      $region18: #{bam_channel.3} parent=15 // pred_check_branch
        %107 = sbr.rel (%p105) target = $region20
      $region19: #{bam_channel.3} parent=15 // pred_region
        %p108 = scmp.lt.s32.totalorder %s8, 1
        %s109 = scalar_select %p108, %s8, 1
        %s110 = smul.addr %s109, 8
        %s111 = smul.addr %s110, 8
        %s112 = scalar_lea.vmem %s0, %s111
      $region20: #{bam_channel.3} parent=15 // pred_fallthru
        _
      // Predicated region
      $region21: #{bam_channel.3} parent=15 // pred_check
        %p113 = pneg %p54
      $region22: #{bam_channel.3} parent=15 // pred_check_branch
        %115 = sbr.rel (%p113) target = $region24
      $region23: #{bam_channel.3} parent=15 // pred_region
        %p116 = scmp.lt.s32.totalorder %s8, 1
        %s117 = scalar_select %p116, %s8, 1
        %s118 = smul.addr %s117, 16
        %s119 = smul.addr %s118, 8
        %s120 = scalar_lea.vmem %s1, %s119
      $region24: #{bam_channel.3} parent=15 // pred_fallthru
        _
    $region16: #{bam_channel.3} parent=5 // pred_fallthru
      _
    %p121 = scmp.le.s32.totalorder 1, %s8
    %p122 = scmp.lt.s32.totalorder %s8, 3
    %p123 = pnand %p121, %p122
    %p124 = pneg %p123
    // Predicated region
    $region25: #{bam_channel.3} parent=5 // pred_check
      _
    $region26: #{bam_channel.3} parent=5 // pred_check_branch
      %126 = sbr.rel (%p123) target = $region28
    $region27: #{bam_channel.3} parent=5 // pred_region
      %s127 = ssub.s32 %s8, 1
      %p128 = scmp.lt.s32.totalorder %s13, 1
      %s129 = scalar_select %p128, %s13, 1
      %s130 = smul.addr %s129, 8
      %s131 = smul.addr %s130, 8
      %s132 = scalar_lea.vmem %s0, %s131
      %p133 = pneg %p34
      %p134 = pneg %p31
      %p135 = scmp.lt.s32.totalorder %s13, 1
      %s136 = scalar_select %p135, %s13, 1
      %s137 = smul.addr %s136, 16
      %s138 = smul.addr %s137, 8
      %s139 = scalar_lea.vmem %s1, %s138
      %p140 = pneg %p60
      %p141 = pneg %p57
      %p142 = pneg %p86
      %p143 = pneg %p83
      %p144 = scmp.lt.s32.totalorder %s13, 1
      %s145 = scalar_select %p144, %s13, 1
      %s146 = smul.addr %s145, 16
      %s147 = smul.addr %s146, 8
      %s148 = scalar_lea.vmem %s2, %s147
      %p149 = scmp.lt.s32.totalorder %s13, 1
      %s150 = scalar_select %p149, %s13, 1
      %s151 = smul.addr %s150, 8
      %s152 = smul.addr %s151, 8
      %s153 = scalar_lea.vmem %s0, %s152
      %p154 = scmp.lt.s32.totalorder %s13, 1
      %s155 = scalar_select %p154, %s13, 1
      %s156 = smul.addr %s155, 16
      %s157 = smul.addr %s156, 8
      %s158 = scalar_lea.vmem %s1, %s157
      %p159 = scmp.lt.s32.totalorder %s13, 1
      %s160 = scalar_select %p159, %s13, 1
      %s161 = smul.addr %s160, 16
      %s162 = smul.addr %s161, 8
      %s163 = scalar_lea.vmem %s2, %s162
      %v164 = vld [vmem:[%s153] sm:$0xff]
      %v165 = vld [vmem:[%s153 + $0x8] sm:$0xff]
      %v166 = vld [vmem:[%s153 + $0x10] sm:$0xff]
      %v167 = vld [vmem:[%s153 + $0x18] sm:$0xff]
      %v168 = vld [vmem:[%s153 + $0x20] sm:$0xff]
      %v169 = vld [vmem:[%s153 + $0x28] sm:$0xff]
      %v170 = vld [vmem:[%s153 + $0x30] sm:$0xff]
      %v171 = vld [vmem:[%s153 + $0x38] sm:$0xff]
      %v172 = vld [vmem:[%s158] sm:$0xff]
      %v173 = vld [vmem:[%s158 + $0x8] sm:$0xff]
      %v174 = vld [vmem:[%s158 + $0x10] sm:$0xff]
      %v175 = vld [vmem:[%s158 + $0x18] sm:$0xff]
      %v176 = vld [vmem:[%s158 + $0x20] sm:$0xff]
      %v177 = vld [vmem:[%s158 + $0x28] sm:$0xff]
      %v178 = vld [vmem:[%s158 + $0x30] sm:$0xff]
      %v179 = vld [vmem:[%s158 + $0x38] sm:$0xff]
      %v180 = vld [vmem:[%s158 + $0x40] sm:$0xff]
      %v181 = vld [vmem:[%s158 + $0x48] sm:$0xff]
      %v182 = vld [vmem:[%s158 + $0x50] sm:$0xff]
      %v183 = vld [vmem:[%s158 + $0x58] sm:$0xff]
      %v184 = vld [vmem:[%s158 + $0x60] sm:$0xff]
      %v185 = vld [vmem:[%s158 + $0x68] sm:$0xff]
      %v186 = vld [vmem:[%s158 + $0x70] sm:$0xff]
      %v187 = vld [vmem:[%s158 + $0x78] sm:$0xff]
      %189 = vset.pattern.permute.xlu0 0
      %190 = vperm.xlu0 %189, %v164
      %v191 = vpop.permute.xlu0 %190
      %194 = vset.pattern.permute.xlu0 0
      %195 = vperm.xlu0 %194, %v165
      %v196 = vpop.permute.xlu0 %195
      %199 = vset.pattern.permute.xlu0 0
      %200 = vperm.xlu0 %199, %v166
      %v201 = vpop.permute.xlu0 %200
      %204 = vset.pattern.permute.xlu0 0
      %205 = vperm.xlu0 %204, %v167
      %v206 = vpop.permute.xlu0 %205
      %209 = vset.pattern.permute.xlu0 0
      %210 = vperm.xlu0 %209, %v168
      %v211 = vpop.permute.xlu0 %210
      %214 = vset.pattern.permute.xlu0 0
      %215 = vperm.xlu0 %214, %v169
      %v216 = vpop.permute.xlu0 %215
      %219 = vset.pattern.permute.xlu0 0
      %220 = vperm.xlu0 %219, %v170
      %v221 = vpop.permute.xlu0 %220
      %224 = vset.pattern.permute.xlu0 0
      %225 = vperm.xlu0 %224, %v171
      %v226 = vpop.permute.xlu0 %225
      %v228 = vmul.f32 %v172, %v191
      %v229 = vmul.f32 %v173, %v191
      %v230 = vmul.f32 %v174, %v196
      %v231 = vmul.f32 %v175, %v196
      %v232 = vmul.f32 %v176, %v201
      %v233 = vmul.f32 %v177, %v201
      %v234 = vmul.f32 %v178, %v206
      %v235 = vmul.f32 %v179, %v206
      %v236 = vmul.f32 %v180, %v211
      %v237 = vmul.f32 %v181, %v211
      %v238 = vmul.f32 %v182, %v216
      %v239 = vmul.f32 %v183, %v216
      %v240 = vmul.f32 %v184, %v221
      %v241 = vmul.f32 %v185, %v221
      %v242 = vmul.f32 %v186, %v226
      %v243 = vmul.f32 %v187, %v226
      %244 = vst [vmem:[%s163] sm:$0xff] %v228
      %245 = vst [vmem:[%s163 + $0x8] sm:$0xff] %v229
      %246 = vst [vmem:[%s163 + $0x10] sm:$0xff] %v230
      %247 = vst [vmem:[%s163 + $0x18] sm:$0xff] %v231
      %248 = vst [vmem:[%s163 + $0x20] sm:$0xff] %v232
      %249 = vst [vmem:[%s163 + $0x28] sm:$0xff] %v233
      %250 = vst [vmem:[%s163 + $0x30] sm:$0xff] %v234
      %251 = vst [vmem:[%s163 + $0x38] sm:$0xff] %v235
      %252 = vst [vmem:[%s163 + $0x40] sm:$0xff] %v236
      %253 = vst [vmem:[%s163 + $0x48] sm:$0xff] %v237
      %254 = vst [vmem:[%s163 + $0x50] sm:$0xff] %v238
      %255 = vst [vmem:[%s163 + $0x58] sm:$0xff] %v239
      %256 = vst [vmem:[%s163 + $0x60] sm:$0xff] %v240
      %257 = vst [vmem:[%s163 + $0x68] sm:$0xff] %v241
      %258 = vst [vmem:[%s163 + $0x70] sm:$0xff] %v242
      %259 = vst [vmem:[%s163 + $0x78] sm:$0xff] %v243
      %p260 = scmp.lt.s32.totalorder %s13, 1
      %s261 = scalar_select %p260, %s13, 1
      %s262 = smul.addr %s261, 16
      %s263 = smul.addr %s262, 8
      %s264 = scalar_lea.vmem %s2, %s263
      // Predicated region
      $region29: #{bam_channel.3} parent=27 // pred_check
        %p265 = pneg %p83
      $region30: #{bam_channel.3} parent=27 // pred_check_branch
        %267 = sbr.rel (%p265) target = $region32
      $region31: #{bam_channel.3} parent=27 // pred_region
        _
      $region32: #{bam_channel.3} parent=27 // pred_fallthru
        _
    $region28: #{bam_channel.3} parent=5 // pred_fallthru
      _
    %p268 = scmp.le.s32.totalorder 2, %s8
    // Predicated region
    $region33: #{bam_channel.3} parent=5 // pred_check
      %p269 = pneg %p268
    $region34: #{bam_channel.3} parent=5 // pred_check_branch
      %271 = sbr.rel (%p269) target = $region36
    $region35: #{bam_channel.3} parent=5 // pred_region
      %s272 = ssub.s32 %s8, 2
      // Predicated region
      $region37: #{bam_channel.3} parent=35 // pred_check
        %p273 = pneg %p89
      $region38: #{bam_channel.3} parent=35 // pred_check_branch
        %275 = sbr.rel (%p273) target = $region40
      $region39: #{bam_channel.3} parent=35 // pred_region
        %p276 = scmp.lt.s32.totalorder %s14, 1
        %s277 = scalar_select %p276, %s14, 1
        %s278 = smul.addr %s277, 16
        %s279 = smul.addr %s278, 8
        %s280 = scalar_lea.vmem %s2, %s279
      $region40: #{bam_channel.3} parent=35 // pred_fallthru
        _
    $region36: #{bam_channel.3} parent=5 // pred_fallthru
      _
  $region6: #{bam_channel.3} parent=0 // loop_footer
    %s12 = sadd.s32 1, %s8
  $region7: #{bam_channel.3} parent=0 // loop_footer_branch
    %7 = sbr.rel target = $region3
  $region8: #{bam_channel.3} parent=0 // loop_exit
    _

// kernel: bam_channel.2
$region0: #{bam_channel.2}
  #allocation0 [shape = 'u32[]', space=smem, size = 0x4, offset = 0x4, fixed_abs, tag = 'smem constant byte address 0x4 - core index']
  #allocation1 [shape = 'u32[72,128]{1,0:T(1,128)}', space=vmem, size = 0x9000, scoped, tag = 'internal scratch']
  %s0 = inlined_call_operand.vmem [shape: f32[2,64,256], index: 0, kind: input, shape index: {}]
  %s1 = inlined_call_operand.vmem [shape: f32[2,64,1], index: 1, kind: output, shape index: {}]
  %s2 = sld [smem:[#allocation0]]
  $region37: #{bam_channel.2} parent=0
    _
  %s4 = ssub.s32 1, %s2
  %s5 = scalar_select 0, %s4, %s2
  loop: start=0, step=1, limit=4
  $region2: #{bam_channel.2} parent=0 // loop_pre_header
    _
  $region3: #{bam_channel.2} parent=0 // loop_header
    %s7 = sphi 0, %s11
    %p8 = scmp.ge.s32.totalorder %s7, 4
    %s17 = sphi 0, %s19
    %s20 = sphi 0, %s17
    %s21 = sphi 0, %s20
    %s37 = sphi 0, %s21
    %s43 = sphi 0, %s45
    %s46 = sphi 0, %s43
    %s47 = sphi 0, %s46
    %s63 = sphi 0, %s47
  $region4: #{bam_channel.2} parent=0 // loop_header_branch
    %10 = sbr.rel (%p8) target = $region8
  $region5: #{bam_channel.2} parent=0 // loop_body
    %s12 = ssub.s32 %s7, 1
    %s13 = ssub.s32 %s7, 2
    %s14 = sadd.s32 %s7, 1
    %s15 = ssub.s32 %s7, %s14
    %p16 = scmp.eq.s32.totalorder %s15, 0
    %s18 = sadd.s32 %s17, 1
    %s19 = scalar_select %p16, %s17, %s18
    %p22 = pneg %p16
    %p23 = scmp.eq.s32.totalorder %s7, 1
    %p24 = por %p22, %p23
    %p25 = scmp.ne.s32.totalorder %s17, %s20
    %p26 = scmp.eq.s32.totalorder %s7, 0
    %p27 = por %p25, %p26
    %p28 = scmp.ne.s32.totalorder %s17, %s20
    %p29 = scmp.eq.s32.totalorder %s12, 1
    %p30 = por %p28, %p29
    %p31 = scmp.ne.s32.totalorder %s20, %s21
    %p32 = scmp.eq.s32.totalorder %s12, 0
    %p33 = por %p31, %p32
    %p34 = scmp.ne.s32.totalorder %s20, %s21
    %p35 = scmp.eq.s32.totalorder %s13, 1
    %p36 = por %p34, %p35
    %p38 = scmp.ne.s32.totalorder %s21, %s37
    %p39 = scmp.eq.s32.totalorder %s13, 0
    %p40 = por %p38, %p39
    %s41 = ssub.s32 %s7, %s14
    %p42 = scmp.eq.s32.totalorder %s41, 0
    %s44 = sadd.s32 %s43, 1
    %s45 = scalar_select %p42, %s43, %s44
    %p48 = pneg %p42
    %p49 = scmp.eq.s32.totalorder %s7, 1
    %p50 = por %p48, %p49
    %p51 = scmp.ne.s32.totalorder %s43, %s46
    %p52 = scmp.eq.s32.totalorder %s7, 0
    %p53 = por %p51, %p52
    %p54 = scmp.ne.s32.totalorder %s43, %s46
    %p55 = scmp.eq.s32.totalorder %s12, 1
    %p56 = por %p54, %p55
    %p57 = scmp.ne.s32.totalorder %s46, %s47
    %p58 = scmp.eq.s32.totalorder %s12, 0
    %p59 = por %p57, %p58
    %p60 = scmp.ne.s32.totalorder %s46, %s47
    %p61 = scmp.eq.s32.totalorder %s13, 1
    %p62 = por %p60, %p61
    %p64 = scmp.ne.s32.totalorder %s47, %s63
    %p65 = scmp.eq.s32.totalorder %s13, 0
    %p66 = por %p64, %p65
    %p67 = scmp.le.s32.totalorder 1, %s7
    %p68 = scmp.lt.s32.totalorder %s7, 3
    %p69 = pnand %p67, %p68
    %p70 = pneg %p69
    // Predicated region
    $region9: #{bam_channel.2} parent=5 // pred_check
      _
    $region10: #{bam_channel.2} parent=5 // pred_check_branch
      %72 = sbr.rel (%p69) target = $region12
    $region11: #{bam_channel.2} parent=5 // pred_region
      %s73 = ssub.s32 %s7, 1
    $region12: #{bam_channel.2} parent=5 // pred_fallthru
      _
    %p74 = scmp.lt.s32.totalorder %s7, 2
    // Predicated region
    $region13: #{bam_channel.2} parent=5 // pred_check
      %p75 = pneg %p74
    $region14: #{bam_channel.2} parent=5 // pred_check_branch
      %77 = sbr.rel (%p75) target = $region16
    $region15: #{bam_channel.2} parent=5 // pred_region
      // Predicated region
      $region17: #{bam_channel.2} parent=15 // pred_check
        %p78 = pneg %p27
      $region18: #{bam_channel.2} parent=15 // pred_check_branch
        %80 = sbr.rel (%p78) target = $region20
      $region19: #{bam_channel.2} parent=15 // pred_region
        %p81 = scmp.lt.s32.totalorder %s7, 1
        %s82 = scalar_select %p81, %s7, 1
        %s83 = smul.addr %s82, 16
        %s84 = smul.addr %s83, 8
        %s85 = scalar_lea.vmem %s0, %s84
      $region20: #{bam_channel.2} parent=15 // pred_fallthru
        _
    $region16: #{bam_channel.2} parent=5 // pred_fallthru
      _
    %p86 = scmp.le.s32.totalorder 1, %s7
    %p87 = scmp.lt.s32.totalorder %s7, 3
    %p88 = pnand %p86, %p87
    %p89 = pneg %p88
    // Predicated region
    $region21: #{bam_channel.2} parent=5 // pred_check
      _
    $region22: #{bam_channel.2} parent=5 // pred_check_branch
      %91 = sbr.rel (%p88) target = $region24
    $region23: #{bam_channel.2} parent=5 // pred_region
      %s92 = ssub.s32 %s7, 1
      %p93 = scmp.lt.s32.totalorder %s12, 1
      %s94 = scalar_select %p93, %s12, 1
      %s95 = smul.addr %s94, 16
      %s96 = smul.addr %s95, 8
      %s97 = scalar_lea.vmem %s0, %s96
      %p98 = pneg %p33
      %p99 = pneg %p30
      %p100 = pneg %p59
      %p101 = pneg %p56
      %p102 = scmp.lt.s32.totalorder %s12, 1
      %s103 = scalar_select %p102, %s12, 1
      %s104 = smul.addr %s103, 8
      %s105 = smul.addr %s104, 8
      %s106 = scalar_lea.vmem %s1, %s105
      %p107 = scmp.lt.s32.totalorder %s12, 1
      %s108 = scalar_select %p107, %s12, 1
      %s109 = smul.addr %s108, 16
      %s110 = smul.addr %s109, 8
      %s111 = scalar_lea.vmem %s0, %s110
      %p112 = scmp.lt.s32.totalorder %s12, 1
      %s113 = scalar_select %p112, %s12, 1
      %s114 = smul.addr %s113, 8
      %s115 = smul.addr %s114, 8
      %s116 = scalar_lea.vmem %s1, %s115
      %v117 = vld [vmem:[%s111] sm:$0xff]
      %v118 = vld [vmem:[%s111 + $0x8] sm:$0xff]
      %v119 = vld [vmem:[%s111 + $0x10] sm:$0xff]
      %v120 = vld [vmem:[%s111 + $0x18] sm:$0xff]
      %v121 = vld [vmem:[%s111 + $0x20] sm:$0xff]
      %v122 = vld [vmem:[%s111 + $0x28] sm:$0xff]
      %v123 = vld [vmem:[%s111 + $0x30] sm:$0xff]
      %v124 = vld [vmem:[%s111 + $0x38] sm:$0xff]
      %v125 = vld [vmem:[%s111 + $0x40] sm:$0xff]
      %v126 = vld [vmem:[%s111 + $0x48] sm:$0xff]
      %v127 = vld [vmem:[%s111 + $0x50] sm:$0xff]
      %v128 = vld [vmem:[%s111 + $0x58] sm:$0xff]
      %v129 = vld [vmem:[%s111 + $0x60] sm:$0xff]
      %v130 = vld [vmem:[%s111 + $0x68] sm:$0xff]
      %v131 = vld [vmem:[%s111 + $0x70] sm:$0xff]
      %v132 = vld [vmem:[%s111 + $0x78] sm:$0xff]
      %v133 = vadd.f32 %v117, %v118
      %134 = vadd.xlane.f32.xlu0 %v133
      %v135 = vpop.xlane.xlu0 %134
      %v136 = vadd.f32 %v119, %v120
      %137 = vadd.xlane.f32.xlu0 %v136
      %v138 = vpop.xlane.xlu0 %137
      %v139 = vadd.f32 %v121, %v122
      %140 = vadd.xlane.f32.xlu0 %v139
      %v141 = vpop.xlane.xlu0 %140
      %v142 = vadd.f32 %v123, %v124
      %143 = vadd.xlane.f32.xlu0 %v142
      %v144 = vpop.xlane.xlu0 %143
      %v145 = vadd.f32 %v125, %v126
      %146 = vadd.xlane.f32.xlu0 %v145
      %v147 = vpop.xlane.xlu0 %146
      %v148 = vadd.f32 %v127, %v128
      %149 = vadd.xlane.f32.xlu0 %v148
      %v150 = vpop.xlane.xlu0 %149
      %v151 = vadd.f32 %v129, %v130
      %152 = vadd.xlane.f32.xlu0 %v151
      %v153 = vpop.xlane.xlu0 %152
      %v154 = vadd.f32 %v131, %v132
      %155 = vadd.xlane.f32.xlu0 %v154
      %v156 = vpop.xlane.xlu0 %155
      %v157 = vmul.f32 %v135, 0.00390625
      %v158 = vmul.f32 %v138, 0.00390625
      %v159 = vmul.f32 %v141, 0.00390625
      %v160 = vmul.f32 %v144, 0.00390625
      %v161 = vmul.f32 %v147, 0.00390625
      %v162 = vmul.f32 %v150, 0.00390625
      %v163 = vmul.f32 %v153, 0.00390625
      %v164 = vmul.f32 %v156, 0.00390625
      %vm165 = vcmask 7168
      %166 = vst.msk [vmem:[%s116] sm:$0xff] %vm165, %v157
      %167 = vst.msk [vmem:[%s116 + $0x8] sm:$0xff] %vm165, %v158
      %168 = vst.msk [vmem:[%s116 + $0x10] sm:$0xff] %vm165, %v159
      %169 = vst.msk [vmem:[%s116 + $0x18] sm:$0xff] %vm165, %v160
      %170 = vst.msk [vmem:[%s116 + $0x20] sm:$0xff] %vm165, %v161
      %171 = vst.msk [vmem:[%s116 + $0x28] sm:$0xff] %vm165, %v162
      %172 = vst.msk [vmem:[%s116 + $0x30] sm:$0xff] %vm165, %v163
      %173 = vst.msk [vmem:[%s116 + $0x38] sm:$0xff] %vm165, %v164
      %p174 = scmp.lt.s32.totalorder %s12, 1
      %s175 = scalar_select %p174, %s12, 1
      %s176 = smul.addr %s175, 8
      %s177 = smul.addr %s176, 8
      %s178 = scalar_lea.vmem %s1, %s177
      // Predicated region
      $region25: #{bam_channel.2} parent=23 // pred_check
        %p179 = pneg %p56
      $region26: #{bam_channel.2} parent=23 // pred_check_branch
        %181 = sbr.rel (%p179) target = $region28
      $region27: #{bam_channel.2} parent=23 // pred_region
        _
      $region28: #{bam_channel.2} parent=23 // pred_fallthru
        _
    $region24: #{bam_channel.2} parent=5 // pred_fallthru
      _
    %p182 = scmp.le.s32.totalorder 2, %s7
    // Predicated region
    $region29: #{bam_channel.2} parent=5 // pred_check
      %p183 = pneg %p182
    $region30: #{bam_channel.2} parent=5 // pred_check_branch
      %185 = sbr.rel (%p183) target = $region32
    $region31: #{bam_channel.2} parent=5 // pred_region
      %s186 = ssub.s32 %s7, 2
      // Predicated region
      $region33: #{bam_channel.2} parent=31 // pred_check
        %p187 = pneg %p62
      $region34: #{bam_channel.2} parent=31 // pred_check_branch
        %189 = sbr.rel (%p187) target = $region36
      $region35: #{bam_channel.2} parent=31 // pred_region
        %p190 = scmp.lt.s32.totalorder %s13, 1
        %s191 = scalar_select %p190, %s13, 1
        %s192 = smul.addr %s191, 8
        %s193 = smul.addr %s192, 8
        %s194 = scalar_lea.vmem %s1, %s193
      $region36: #{bam_channel.2} parent=31 // pred_fallthru
        _
    $region32: #{bam_channel.2} parent=5 // pred_fallthru
      _
  $region6: #{bam_channel.2} parent=0 // loop_footer
    %s11 = sadd.s32 1, %s7
  $region7: #{bam_channel.2} parent=0 // loop_footer_branch
    %6 = sbr.rel target = $region3
  $region8: #{bam_channel.2} parent=0 // loop_exit
    _

</llo_original>
